<compile_context>
chip_gen: v5e
topology: v5e:2x2
jax: 0.10.0
libtpu: 0.0.40
codegen_flags: <defaults>
</compile_context>

<pallas_src>
import jax
import jax.numpy as jnp
from jax import lax
from jax.experimental import pallas as pl
from jax.experimental.pallas import tpu as pltpu

_SUBLANES = 8
_LANES = 128


def _pick_tile(dim, target, align):
    """Largest `align`-aligned tile <= target that evenly divides `dim`.

    Falls back to the full dim (always a legal block shape)."""
    if dim <= target:
        return dim
    t = (target // align) * align
    while t >= align:
        if dim % t == 0:
            return t
        t -= align
    # TODO(synk): non-factorable lengths fall back to one full-dim block; pad
    # in the caller (or use a cdiv grid + tail masking) if this becomes a
    # VMEM problem for awkward sequence lengths.
    return dim


def _physical_vmem_bytes():
    try:
        return int(pltpu.get_tpu_info().vmem_capacity_bytes)
    except Exception:
        return 64 << 20        # conservative: v7x has 64 MiB per TensorCore


def _vmem_limit(estimate_bytes):
    """Estimate + headroom, clamped per-generation below physical VMEM."""
    phys = _physical_vmem_bytes()
    cap = int(phys * 0.85)     # ~54 MiB on v7x, ~108 MiB on v5e/v6e
    lo = min(32 << 20, cap)
    return int(min(max(estimate_bytes + (8 << 20), lo), cap))


# --------------------------------------------------------------------------
# Kernel 1: needs_weights=True  (monolithic softmax over full Skv, writes W)
# --------------------------------------------------------------------------
def _make_weights_kernel(has_am, has_kpm):
    def kernel(*refs):
        it = iter(refs)
        q_ref = next(it)            # (1, 1, tq, K)
        k_ref = next(it)            # (1, 1, Skv, K)
        v_ref = next(it)            # (1, 1, Skv, V)
        am_ref = next(it) if has_am else None    # (1, tq, Skv) additive bias
        kpm_ref = next(it) if has_kpm else None  # (1, 1, Skv)  additive bias
        o_ref = next(it)            # (1, 1, tq, V)
        w_ref = next(it)            # (1, 1, tq, Skv)

        k_dim = q_ref.shape[-1]
        scale = k_dim ** -0.5
        # Fold 1/sqrt(K) into q: a (tq,K) multiply instead of (tq,Skv).
        q = q_ref[0, 0] * jnp.asarray(scale, q_ref.dtype)          # (tq, K)
        k = k_ref[0, 0]                                            # (Skv, K)

        # QK^T with no explicit transpose: contract the last dim of both.
        logits = lax.dot_general(
            q, k, dimension_numbers=(((1,), (1,)), ((), ())),
            preferred_element_type=jnp.float32)                    # (tq, Skv)

        if has_am:
            logits = logits + am_ref[0].astype(jnp.float32)
        if has_kpm:
            logits = logits + kpm_ref[0].astype(jnp.float32)       # (1,Skv)

        # float32 softmax (matches torch softmax(..., dtype=float32)).
        m = jnp.max(logits, axis=-1, keepdims=True)
        p = jnp.exp(logits - m)
        denom = jnp.sum(p, axis=-1, keepdims=True)
        # Exact reciprocal: these weights are materialized, keep them
        # softmax-exact (approx reciprocal broke tolerance).
        p = p * pl.reciprocal(denom, approx=False)

        w = p.astype(w_ref.dtype)   # type_as(seqs)
        # TODO(synk): attention-weight dropout (training & attn_dropout_p>0)
        # is not implemented; module default attn_dropout_p=0.0 / eval => no-op.
        attn = jnp.dot(w, v_ref[0, 0], preferred_element_type=jnp.float32)

        w_ref[0, 0] = w
        o_ref[0, 0] = attn.astype(o_ref.dtype)

    return kernel


# --------------------------------------------------------------------------
# Kernel 2: needs_weights=False  (flash-style online softmax over Skv tiles)
# --------------------------------------------------------------------------
def _make_flash_kernel(has_am, has_kpm):
    def kernel(*refs):
        it = iter(refs)
        q_ref = next(it)            # (1, 1, tq, K)
        k_ref = next(it)            # (1, 1, tkv, K)
        v_ref = next(it)            # (1, 1, tkv, V)
        am_ref = next(it) if has_am else None    # (1, tq, tkv) additive bias
        kpm_ref = next(it) if has_kpm else None  # (1, 1, tkv)  additive bias
        o_ref = next(it)            # (1, 1, tq, V)
        m_sc = next(it)             # (tq, 1) f32
        l_sc = next(it)             # (tq, 1) f32
        acc_sc = next(it)           # (tq, V) f32

        ki = pl.program_id(3)

        @pl.when(ki == 0)
        def _():
            m_sc[...] = jnp.full_like(m_sc, -jnp.inf)
            l_sc[...] = jnp.zeros_like(l_sc)
            acc_sc[...] = jnp.zeros_like(acc_sc)

        k_dim = q_ref.shape[-1]
        scale = k_dim ** -0.5
        q = q_ref[0, 0] * jnp.asarray(scale, q_ref.dtype)          # (tq, K)
        k = k_ref[0, 0]                                            # (tkv, K)
        v = v_ref[0, 0]                                            # (tkv, V)

        logits = lax.dot_general(
            q, k, dimension_numbers=(((1,), (1,)), ((), ())),
            preferred_element_type=jnp.float32)                    # (tq, tkv)
        # Masks are pre-folded to additive float biases: single adds, no
        # compare/select VPU passes in the inner loop.
        if has_am:
            logits = logits + am_ref[0].astype(jnp.float32)
        if has_kpm:
            logits = logits + kpm_ref[0].astype(jnp.float32)       # (1, tkv)

        m_prev = m_sc[...]                                         # (tq, 1)
        m_new = jnp.maximum(m_prev, jnp.max(logits, axis=-1, keepdims=True))
        # Guard (-inf) - (-inf) = nan when every key seen so far is masked;
        # fully-masked rows still end as nan (0 * 1/0), matching the reference.
        m_safe = jnp.where(m_new == -jnp.inf, 0.0, m_new)
        alpha = jnp.exp(m_prev - m_safe)                           # (tq, 1)
        p = jnp.exp(logits - m_safe)                               # (tq, tkv)

        l_sc[...] = alpha * l_sc[...] + jnp.sum(p, axis=-1, keepdims=True)
        acc_sc[...] = alpha * acc_sc[...] + jnp.dot(
            p.astype(v.dtype), v, preferred_element_type=jnp.float32)
        m_sc[...] = m_new

        @pl.when(ki == pl.num_programs(3) - 1)
        def _():
            # Exact reciprocal over a (tq,1) vector: negligible cost, keeps
            # the output tight against the reference softmax.
            inv = pl.reciprocal(l_sc[...], approx=False)
            o_ref[0, 0] = (acc_sc[...] * inv).astype(o_ref.dtype)

    return kernel


# --------------------------------------------------------------------------
# Wrapper
# --------------------------------------------------------------------------
def naive_sdpa(seqs, keys, key_padding_mask, values, *,
               attn_mask=None, needs_weights=False,
               q_tile=256, kv_tile=1024):
    N, H, S, K = seqs.shape
    Skv = keys.shape[2]
    V = values.shape[-1]
    dtype = seqs.dtype
    isz = jnp.dtype(dtype).itemsize

    has_am = attn_mask is not None
    has_kpm = key_padding_mask is not None

    phys = _physical_vmem_bytes()
    budget = int(phys * 0.45)          # leave room for double-buffering etc.

    # MXU-friendly q tile: 128-aligned whenever S allows it.
    q_align = _LANES if S >= _LANES else _SUBLANES
    tq = _pick_tile(S, q_tile, q_align)

    inputs = [seqs, keys, values]
    am = None
    if has_am:
        # Keep the mask in the input dtype (bf16 inputs -> half the mask
        # HBM/VMEM traffic); it is added into f32 logits in-kernel anyway.
        am = jnp.asarray(attn_mask).astype(dtype)
        if am.ndim == 2:
            am = am[None, :, :]        # ([H] or 1, S, Skv) — no H broadcast copy
        inputs.append(am)
    if has_kpm:
        # Fold the boolean padding mask into an additive bias (0 / -inf) once
        # in the wrapper: one broadcast add in-kernel instead of compare+select.
        kpm_keep = jnp.asarray(key_padding_mask) != 0
        kpm = jnp.where(kpm_keep,
                        jnp.zeros((), dtype),
                        jnp.asarray(-jnp.inf, dtype)).reshape(N, 1, Skv)
        inputs.append(kpm)

    if needs_weights:
        # ---- weights path: full-Skv softmax, weights materialized ----
        def w_est(t):
            b = 2 * (t * K * isz + Skv * K * isz + Skv * V * isz
                     + t * V * isz + t * Skv * isz)
            if has_am:
                b += 2 * t * Skv * isz
            if has_kpm:
                b += 2 * Skv * isz
            b += 3 * t * Skv * 4       # f32 logits / p intermediates
            return b

        # Shrink tq if the untiled-Skv footprint would blow the VMEM budget
        # (matters on v7x's 64 MiB TensorCore VMEM for long kv sequences).
        while w_est(tq) > budget:
            new_tq = _pick_tile(S, max(tq // 2, _SUBLANES), _SUBLANES)
            if new_tq >= tq:
                break
            tq = new_tq

        # Grid (N, H, q_tiles): q innermost so the full-Skv K/V blocks stay
        # VMEM-resident across all q tiles of a given (n, h).
        grid = (N, H, S // tq)
        in_specs = [
            pl.BlockSpec((1, 1, tq, K), lambda n, h, qi: (n, h, qi, 0)),
            pl.BlockSpec((1, 1, Skv, K), lambda n, h, qi: (n, h, 0, 0)),
            pl.BlockSpec((1, 1, Skv, V), lambda n, h, qi: (n, h, 0, 0)),
        ]
        if has_am:
            if am.shape[0] == 1:
                in_specs.append(
                    pl.BlockSpec((1, tq, Skv), lambda n, h, qi: (0, qi, 0)))
            else:
                in_specs.append(
                    pl.BlockSpec((1, tq, Skv), lambda n, h, qi: (h, qi, 0)))
        if has_kpm:
            in_specs.append(
                pl.BlockSpec((1, 1, Skv), lambda n, h, qi: (n, 0, 0)))
        out_specs = [
            pl.BlockSpec((1, 1, tq, V), lambda n, h, qi: (n, h, qi, 0)),
            pl.BlockSpec((1, 1, tq, Skv), lambda n, h, qi: (n, h, qi, 0)),
        ]
        out_shape = (
            jax.ShapeDtypeStruct((N, H, S, V), dtype),
            jax.ShapeDtypeStruct((N, H, S, Skv), dtype),
        )

        attn, w = pl.pallas_call(
            _make_weights_kernel(has_am, has_kpm),
            grid_spec=pltpu.PrefetchScalarGridSpec(
                num_scalar_prefetch=0, grid=grid,
                in_specs=in_specs, out_specs=out_specs),
            out_shape=out_shape,
            compiler_params=pltpu.CompilerParams(
                dimension_semantics=("parallel", "parallel", "parallel"),
                vmem_limit_bytes=_vmem_limit(w_est(tq))),
        )(*inputs)
        return attn, w

    # ---- weights-free path: flash-style, kv tiled, no weights HBM traffic ----
    tkv = _pick_tile(Skv, kv_tile, _LANES)

    def f_est(tk):
        b = 2 * (tq * K * isz + tk * K * isz + tk * V * isz + tq * V * isz)
        if has_am:
            b += 2 * tq * tk * isz
        if has_kpm:
            b += 2 * tk * isz
        b += (2 * tq + tq * V) * 4     # m / l / acc f32 scratch
        b += 3 * tq * tk * 4           # f32 logits / p intermediates
        return b

    while f_est(tkv) > budget:
        new_tkv = _pick_tile(Skv, max(tkv // 2, _LANES), _LANES)
        if new_tkv >= tkv:
            break
        tkv = new_tkv

    grid = (N, H, S // tq, Skv // tkv)
    in_specs = [
        pl.BlockSpec((1, 1, tq, K), lambda n, h, qi, ki: (n, h, qi, 0)),
        pl.BlockSpec((1, 1, tkv, K), lambda n, h, qi, ki: (n, h, ki, 0)),
        pl.BlockSpec((1, 1, tkv, V), lambda n, h, qi, ki: (n, h, ki, 0)),
    ]
    if has_am:
        if am.shape[0] == 1:
            in_specs.append(
                pl.BlockSpec((1, tq, tkv), lambda n, h, qi, ki: (0, qi, ki)))
        else:
            in_specs.append(
                pl.BlockSpec((1, tq, tkv), lambda n, h, qi, ki: (h, qi, ki)))
    if has_kpm:
        in_specs.append(
            pl.BlockSpec((1, 1, tkv), lambda n, h, qi, ki: (n, 0, ki)))
    out_specs = pl.BlockSpec((1, 1, tq, V), lambda n, h, qi, ki: (n, h, qi, 0))
    out_shape = jax.ShapeDtypeStruct((N, H, S, V), dtype)
    scratch_shapes = [
        pltpu.VMEM((tq, 1), jnp.float32),   # running max
        pltpu.VMEM((tq, 1), jnp.float32),   # running denominator
        pltpu.VMEM((tq, V), jnp.float32),   # output accumulator
    ]

    attn = pl.pallas_call(
        _make_flash_kernel(has_am, has_kpm),
        grid_spec=pltpu.PrefetchScalarGridSpec(
            num_scalar_prefetch=0, grid=grid,
            in_specs=in_specs, out_specs=out_specs,
            scratch_shapes=scratch_shapes),
        out_shape=out_shape,
        compiler_params=pltpu.CompilerParams(
            dimension_semantics=("parallel", "parallel", "parallel",
                                 "arbitrary"),
            vmem_limit_bytes=_vmem_limit(f_est(tkv))),
    )(*inputs)
    return attn, None


# --------------------------------------------------------------------------
# Pure-JAX reference mirroring _naive_scaled_dot_product_attention
# --------------------------------------------------------------------------
def _reference_sdpa(seqs, keys, values, key_padding_mask, attn_mask):
    logits = jnp.einsum("nhsk,nhtk->nhst", seqs, keys)
    logits = logits * (seqs.shape[-1] ** -0.5)
    if attn_mask is not None:
        logits = logits + attn_mask
    if key_padding_mask is not None:
        m = key_padding_mask[:, None, None, :]
        logits = jnp.where(m, logits, -jnp.inf)
    w = jax.nn.softmax(logits.astype(jnp.float32), axis=-1).astype(seqs.dtype)
    attn = jnp.einsum("nhst,nhtv->nhsv", w, values)
    return attn, w


if __name__ == "__main__":
    N, H, S, Skv, K, V = 2, 4, 8, 8, 32, 32
    key = jax.random.PRNGKey(0)
    kq, kk, kv = jax.random.split(key, 3)

    seqs = jax.random.normal(kq, (N, H, S, K), jnp.float32)
    keys_ = jax.random.normal(kk, (N, H, Skv, K), jnp.float32)
    values = jax.random.normal(kv, (N, H, Skv, V), jnp.float32)

    # additive attention mask (causal-style), shape (H, S, Skv)
    causal = jnp.tril(jnp.ones((S, Skv), jnp.float32))
    attn_mask = jnp.where(causal > 0, 0.0, -1e9)[None, :, :]
    attn_mask = jnp.broadcast_to(attn_mask, (H, S, Skv))

    # key padding mask: mask out last 2 key positions of batch 1
    kpm = jnp.ones((N, Skv), jnp.bool_)
    kpm = kpm.at[1, -2:].set(False)

    # 1) weights requested -> monolithic-softmax kernel
    attn_w, w = naive_sdpa(seqs, keys_, kpm, values,
                           attn_mask=attn_mask, needs_weights=True)
    # 2) no weights -> flash-style kernel (no (S,Skv) weights traffic)
    attn_nw, none_w = naive_sdpa(seqs, keys_, kpm, values,
                                 attn_mask=attn_mask, needs_weights=False)
    # 3) no masks, no weights -> leanest variant (no mask DMA at all)
    attn_plain, _ = naive_sdpa(seqs, keys_, None, values,
                               attn_mask=None, needs_weights=False)
    jax.block_until_ready((attn_w, w, attn_nw, attn_plain))

    ref_attn, ref_w = _reference_sdpa(seqs, keys_, values, kpm, attn_mask)
    ref_plain, _ = _reference_sdpa(seqs, keys_, values, None, None)

    assert none_w is None
    # Tolerances account for default-precision MXU passes on real hardware
    # (both kernel and reference use default matmul precision).
    assert jnp.allclose(attn_w, ref_attn, atol=2e-2, rtol=2e-2)
    assert jnp.allclose(w, ref_w, atol=2e-2, rtol=2e-2)
    assert jnp.allclose(attn_nw, ref_attn, atol=2e-2, rtol=2e-2)
    assert jnp.allclose(attn_plain, ref_plain, atol=2e-2, rtol=2e-2)

    print("KERNEL_OK")
</pallas_src>

<mosaic_0001>
module attributes {stable_mosaic.version = 11 : i64} {
  func.func @kernel(%arg0: i32, %arg1: i32, %arg2: i32, %arg3: memref<1x1x8x32xf32, #tpu.memory_space<vmem>>, %arg4: memref<1x1x8x32xf32, #tpu.memory_space<vmem>>, %arg5: memref<1x1x8x32xf32, #tpu.memory_space<vmem>>, %arg6: memref<1x8x8xf32, #tpu.memory_space<vmem>>, %arg7: memref<1x1x8xf32, #tpu.memory_space<vmem>>, %arg8: memref<1x1x8x32xf32, #tpu.memory_space<vmem>>, %arg9: memref<1x1x8x8xf32, #tpu.memory_space<vmem>>) attributes {dimension_semantics = [#tpu.dimension_semantics<parallel>, #tpu.dimension_semantics<parallel>, #tpu.dimension_semantics<parallel>], iteration_bounds = array<i64: 2, 4, 1>, scalar_prefetch = 0 : i64, scratch_operands = 0 : i64, tpu.core_type = #tpu.core_type<tc>, window_params = [{transform_indices = @transform_0, window_bounds = array<i64: 1, 1, 8, 32>}, {transform_indices = @transform_1, window_bounds = array<i64: 1, 1, 8, 32>}, {transform_indices = @transform_2, window_bounds = array<i64: 1, 1, 8, 32>}, {transform_indices = @transform_3, window_bounds = array<i64: 1, 8, 8>}, {transform_indices = @transform_4, window_bounds = array<i64: 1, 1, 8>}, {transform_indices = @transform_5, window_bounds = array<i64: 1, 1, 8, 32>}, {transform_indices = @transform_6, window_bounds = array<i64: 1, 1, 8, 8>}]} {
    %c0 = arith.constant 0 : index
    %c0_0 = arith.constant 0 : index
    %c0_1 = arith.constant 0 : index
    %c0_2 = arith.constant 0 : index
    %0 = vector.load %arg3[%c0, %c0_0, %c0_1, %c0_2] : memref<1x1x8x32xf32, #tpu.memory_space<vmem>>, vector<1x1x8x32xf32>
    %1 = vector.shape_cast %0 : vector<1x1x8x32xf32> to vector<8x32xf32>
    %cst = arith.constant 0.176776692 : f32
    %2 = vector.broadcast %cst : f32 to vector<8x32xf32>
    %3 = arith.mulf %1, %2 : vector<8x32xf32>
    %c0_3 = arith.constant 0 : index
    %c0_4 = arith.constant 0 : index
    %c0_5 = arith.constant 0 : index
    %c0_6 = arith.constant 0 : index
    %4 = vector.load %arg4[%c0_3, %c0_4, %c0_5, %c0_6] : memref<1x1x8x32xf32, #tpu.memory_space<vmem>>, vector<1x1x8x32xf32>
    %5 = vector.shape_cast %4 : vector<1x1x8x32xf32> to vector<8x32xf32>
    %cst_7 = arith.constant dense<0.000000e+00> : vector<8x8xf32>
    %6 = tpu.matmul %3, %5, %cst_7 {dimension_numbers = #tpu.dot_dimension_numbers<[1], [1], [0], [0], [0, 0, 1, 0], [], []>} : vector<8x32xf32>, vector<8x32xf32>, vector<8x8xf32> -> vector<8x8xf32>
    %c0_8 = arith.constant 0 : index
    %c0_9 = arith.constant 0 : index
    %c0_10 = arith.constant 0 : index
    %7 = vector.load %arg6[%c0_8, %c0_9, %c0_10] : memref<1x8x8xf32, #tpu.memory_space<vmem>>, vector<1x8x8xf32>
    %8 = vector.shape_cast %7 : vector<1x8x8xf32> to vector<8x8xf32>
    %9 = arith.addf %6, %8 : vector<8x8xf32>
    %c0_11 = arith.constant 0 : index
    %c0_12 = arith.constant 0 : index
    %c0_13 = arith.constant 0 : index
    %10 = vector.load %arg7[%c0_11, %c0_12, %c0_13] : memref<1x1x8xf32, #tpu.memory_space<vmem>>, vector<1x1x8xf32>
    %11 = vector.shape_cast %10 : vector<1x1x8xf32> to vector<1x8xf32>
    %12 = vector.broadcast %11 : vector<1x8xf32> to vector<8x8xf32>
    %13 = arith.addf %9, %12 : vector<8x8xf32>
    %cst_14 = arith.constant dense<0xFF800000> : vector<8xf32>
    %14 = vector.multi_reduction <maximumf>, %13, %cst_14 [1] : vector<8x8xf32> to vector<8xf32>
    %15 = vector.shape_cast %14 : vector<8xf32> to vector<8x1xf32>
    %16 = vector.broadcast %15 : vector<8x1xf32> to vector<8x8xf32>
    %17 = arith.subf %13, %16 : vector<8x8xf32>
    %18 = math.exp %17 : vector<8x8xf32>
    %cst_15 = arith.constant dense<0.000000e+00> : vector<8xf32>
    %19 = vector.multi_reduction <add>, %18, %cst_15 [1] : vector<8x8xf32> to vector<8xf32>
    %20 = vector.shape_cast %19 : vector<8xf32> to vector<8x1xf32>
    %21 = tpu.reciprocal %20 : vector<8x1xf32> -> vector<8x1xf32>
    %22 = vector.broadcast %21 : vector<8x1xf32> to vector<8x8xf32>
    %23 = arith.mulf %18, %22 : vector<8x8xf32>
    %c0_16 = arith.constant 0 : index
    %c0_17 = arith.constant 0 : index
    %c0_18 = arith.constant 0 : index
    %c0_19 = arith.constant 0 : index
    %24 = vector.load %arg5[%c0_16, %c0_17, %c0_18, %c0_19] : memref<1x1x8x32xf32, #tpu.memory_space<vmem>>, vector<1x1x8x32xf32>
    %25 = vector.shape_cast %24 : vector<1x1x8x32xf32> to vector<8x32xf32>
    %cst_20 = arith.constant dense<0.000000e+00> : vector<8x32xf32>
    %26 = tpu.matmul %23, %25, %cst_20 {dimension_numbers = #tpu.dot_dimension_numbers<[1], [0], [0], [1], [0, 0, 1, 1], [], []>} : vector<8x8xf32>, vector<8x32xf32>, vector<8x32xf32> -> vector<8x32xf32>
    %c0_21 = arith.constant 0 : index
    %c0_22 = arith.constant 0 : index
    %c0_23 = arith.constant 0 : index
    %c0_24 = arith.constant 0 : index
    %27 = vector.load %arg9[%c0_21, %c0_22, %c0_23, %c0_24] : memref<1x1x8x8xf32, #tpu.memory_space<vmem>>, vector<1x1x8x8xf32>
    %28 = vector.shape_cast %27 : vector<1x1x8x8xf32> to vector<8x8xf32>
    %29 = vector.shape_cast %23 : vector<8x8xf32> to vector<1x1x8x8xf32>
    tpu.vector_store %arg9[%c0_21, %c0_22, %c0_23, %c0_24], %29 {strides = array<i32>} : memref<1x1x8x8xf32, #tpu.memory_space<vmem>>, vector<1x1x8x8xf32>,
    %c0_25 = arith.constant 0 : index
    %c0_26 = arith.constant 0 : index
    %c0_27 = arith.constant 0 : index
    %c0_28 = arith.constant 0 : index
    %30 = vector.load %arg8[%c0_25, %c0_26, %c0_27, %c0_28] : memref<1x1x8x32xf32, #tpu.memory_space<vmem>>, vector<1x1x8x32xf32>
    %31 = vector.shape_cast %30 : vector<1x1x8x32xf32> to vector<8x32xf32>
    %32 = vector.shape_cast %26 : vector<8x32xf32> to vector<1x1x8x32xf32>
    tpu.vector_store %arg8[%c0_25, %c0_26, %c0_27, %c0_28], %32 {strides = array<i32>} : memref<1x1x8x32xf32, #tpu.memory_space<vmem>>, vector<1x1x8x32xf32>,
    return
  }
  func.func @transform_0(%arg0: i32, %arg1: i32, %arg2: i32) -> (i32, i32, i32, i32) {
    %c0_i32 = arith.constant 0 : i32
    %c0_i32_0 = arith.constant 0 : i32
    return %arg0, %arg1, %arg2, %c0_i32 : i32, i32, i32, i32
  }
  func.func @transform_1(%arg0: i32, %arg1: i32, %arg2: i32) -> (i32, i32, i32, i32) {
    %c0_i32 = arith.constant 0 : i32
    %c0_i32_0 = arith.constant 0 : i32
    %c0_i32_1 = arith.constant 0 : i32
    return %arg0, %arg1, %c0_i32, %c0_i32_0 : i32, i32, i32, i32
  }
  func.func @transform_2(%arg0: i32, %arg1: i32, %arg2: i32) -> (i32, i32, i32, i32) {
    %c0_i32 = arith.constant 0 : i32
    %c0_i32_0 = arith.constant 0 : i32
    %c0_i32_1 = arith.constant 0 : i32
    return %arg0, %arg1, %c0_i32, %c0_i32_0 : i32, i32, i32, i32
  }
  func.func @transform_3(%arg0: i32, %arg1: i32, %arg2: i32) -> (i32, i32, i32) {
    %c0_i32 = arith.constant 0 : i32
    %c0_i32_0 = arith.constant 0 : i32
    return %arg1, %arg2, %c0_i32 : i32, i32, i32
  }
  func.func @transform_4(%arg0: i32, %arg1: i32, %arg2: i32) -> (i32, i32, i32) {
    %c0_i32 = arith.constant 0 : i32
    %c0_i32_0 = arith.constant 0 : i32
    %c0_i32_1 = arith.constant 0 : i32
    return %arg0, %c0_i32, %c0_i32_0 : i32, i32, i32
  }
  func.func @transform_5(%arg0: i32, %arg1: i32, %arg2: i32) -> (i32, i32, i32, i32) {
    %c0_i32 = arith.constant 0 : i32
    %c0_i32_0 = arith.constant 0 : i32
    return %arg0, %arg1, %arg2, %c0_i32 : i32, i32, i32, i32
  }
  func.func @transform_6(%arg0: i32, %arg1: i32, %arg2: i32) -> (i32, i32, i32, i32) {
    %c0_i32 = arith.constant 0 : i32
    %c0_i32_0 = arith.constant 0 : i32
    return %arg0, %arg1, %arg2, %c0_i32 : i32, i32, i32, i32
  }
}

</mosaic_0001>

<llo_original>
// kernel: tpu_custom_call.1
$region0: #{tpu_custom_call.1}
  #allocation0 [shape = 'u32[]', space=smem, size = 0x4, offset = 0x4, fixed_abs, tag = 'smem constant byte address 0x4 - core index']
  #allocation1 [shape = 'u32[72,128]{1,0:T(1,128)}', space=vmem, size = 0x9000, scoped, tag = 'internal scratch']
  %s0 = inlined_call_operand.hbm [shape: f32[2,4,8,32], index: 0, kind: input, shape index: {}]
  %s1 = inlined_call_operand.hbm [shape: f32[2,4,8,32], index: 1, kind: input, shape index: {}]
  %s2 = inlined_call_operand.hbm [shape: f32[2,4,8,32], index: 2, kind: input, shape index: {}]
  %s3 = inlined_call_operand.hbm [shape: f32[4,8,8], index: 3, kind: input, shape index: {}]
  %s4 = inlined_call_operand.vmem [shape: f32[2,1,8], index: 4, kind: input, shape index: {}]
  %s5 = inlined_call_operand.hbm [shape: f32[2,4,8,32], index: 5, kind: output, shape index: {0}]
  %s6 = inlined_call_operand.hbm [shape: f32[2,4,8,8], index: 6, kind: output, shape index: {1}]
  %7 = xla_tuple %s5, %s6
  %s8 = sld [smem:[#allocation0]]
  $region77: #{tpu_custom_call.1} parent=0
    _
  %s10 = ssub.s32 1, %s8
  %s11 = scalar_select 0, %s10, %s8
  $region1: #{tpu_custom_call.1} parent=0
    #allocation2 [shape = 'u8[8192]{0}', space=vmem, size = 0x2000, scoped, tag = 'input window, operand 0']
    #allocation3 [shape = 's32[2]{0}', space=sflag, size = 0x8, scoped, tag = 'scoped memory for tpu_custom_call.1']
    #allocation4 [shape = 's32[2]{0}', space=sflag, size = 0x8, scoped, tag = 'scoped memory for tpu_custom_call.1']
    #allocation5 [shape = 'u8[8192]{0}', space=vmem, size = 0x2000, scoped, tag = 'input window, operand 1']
    #allocation6 [shape = 's32[2]{0}', space=sflag, size = 0x8, scoped, tag = 'scoped memory for tpu_custom_call.1']
    #allocation7 [shape = 'u8[8192]{0}', space=vmem, size = 0x2000, scoped, tag = 'input window, operand 2']
    #allocation8 [shape = 'u8[8192]{0}', space=vmem, size = 0x2000, scoped, tag = 'input window, operand 3']
    #allocation9 [shape = 's32[2]{0}', space=sflag, size = 0x8, scoped, tag = 'scoped memory for tpu_custom_call.1']
    #allocation10 [shape = 'u8[8192]{0}', space=vmem, size = 0x2000, scoped, tag = 'output window, operand 0']
    #allocation11 [shape = 'u8[8192]{0}', space=vmem, size = 0x2000, scoped, tag = 'output window, operand 1']
    #allocation12 [shape = 's32[2]{0}', space=sflag, size = 0x8, scoped, tag = 'scoped memory for tpu_custom_call.1']
    %12 = vsyncpa [#allocation3], 0
    %s13 = scalar_lea.sflag [#allocation3], 1
    %14 = vsyncpa %s13, 0
    %15 = vsyncpa [#allocation6], 0
    %s16 = scalar_lea.sflag [#allocation6], 1
    %17 = vsyncpa %s16, 0
    %18 = vsyncpa [#allocation9], 0
    %s19 = scalar_lea.sflag [#allocation9], 1
    %20 = vsyncpa %s19, 0
    %21 = vsyncpa [#allocation4], 0
    %s22 = scalar_lea.sflag [#allocation4], 1
    %23 = vsyncpa %s22, 0
    %24 = vsyncpa [#allocation12], 0
    %s25 = scalar_lea.sflag [#allocation12], 1
    %26 = vsyncpa %s25, 0
    loop: start=0, step=1, limit=10
    $region2: #{tpu_custom_call.1} parent=1 // loop_pre_header
      _
    $region3: #{tpu_custom_call.1} parent=1 // loop_header
      %s28 = sphi 0, %s32
      %p29 = scmp.ge.s32.totalorder %s28, 10
      %s35 = sphi 0, %s54
      %s36 = sphi 0, %s50
      %s37 = sphi 0, %s46
      %s38 = sphi 0, %s35
      %s39 = sphi 0, %s36
      %s40 = sphi 0, %s37
      %s41 = sphi 0, %s38
      %s42 = sphi 0, %s39
      %s43 = sphi 0, %s40
      %s61 = sphi 0, %s63
      %s64 = sphi 0, %s61
      %s65 = sphi 0, %s64
      %s81 = sphi 0, %s65
      %s89 = sphi 0, %s91
      %s92 = sphi 0, %s89
      %s93 = sphi 0, %s92
      %s109 = sphi 0, %s93
      %s117 = sphi 0, %s119
      %s120 = sphi 0, %s117
      %s121 = sphi 0, %s120
      %s137 = sphi 0, %s121
      %s145 = sphi 0, %s147
      %s148 = sphi 0, %s145
      %s149 = sphi 0, %s148
      %s165 = sphi 0, %s149
      %s171 = sphi 0, %s173
      %s174 = sphi 0, %s171
      %s175 = sphi 0, %s174
      %s191 = sphi 0, %s175
      %s201 = sphi 0, %s203
      %s204 = sphi 0, %s201
      %s205 = sphi 0, %s204
      %s221 = sphi 0, %s205
      %s231 = sphi 0, %s233
      %s234 = sphi 0, %s231
      %s235 = sphi 0, %s234
      %s251 = sphi 0, %s235
    $region4: #{tpu_custom_call.1} parent=1 // loop_header_branch
      %31 = sbr.rel (%p29) target = $region8
    $region5: #{tpu_custom_call.1} parent=1 // loop_body
      %s33 = ssub.s32 %s28, 1
      %s34 = ssub.s32 %s28, 2
      %s44 = sadd.s32 1, %s37
      %p45 = scmp.ge.s32.totalorder %s44, 1
      %s46 = scalar_select %p45, 0, %s44
      %s47 = sadd.s32 1, %s36
      %s48 = scalar_select %p45, %s47, %s36
      %p49 = scmp.ge.s32.totalorder %s48, 4
      %s50 = scalar_select %p49, 0, %s48
      %s51 = sadd.s32 1, %s35
      %s52 = scalar_select %p49, %s51, %s35
      %p53 = scmp.ge.s32.totalorder %s52, 2
      %s54 = scalar_select %p53, 0, %s52
      %s55 = ssub.s32 %s35, %s54
      %s56 = ssub.s32 %s36, %s50
      %s57 = sor.u32 %s55, %s56
      %s58 = ssub.s32 %s37, %s46
      %s59 = sor.u32 %s57, %s58
      %p60 = scmp.eq.s32.totalorder %s59, 0
      %s62 = sadd.s32 %s61, 1
      %s63 = scalar_select %p60, %s61, %s62
      %p66 = pneg %p60
      %p67 = scmp.eq.s32.totalorder %s28, 7
      %p68 = por %p66, %p67
      %p69 = scmp.ne.s32.totalorder %s61, %s64
      %p70 = scmp.eq.s32.totalorder %s28, 0
      %p71 = por %p69, %p70
      %p72 = scmp.ne.s32.totalorder %s61, %s64
      %p73 = scmp.eq.s32.totalorder %s33, 7
      %p74 = por %p72, %p73
      %p75 = scmp.ne.s32.totalorder %s64, %s65
      %p76 = scmp.eq.s32.totalorder %s33, 0
      %p77 = por %p75, %p76
      %p78 = scmp.ne.s32.totalorder %s64, %s65
      %p79 = scmp.eq.s32.totalorder %s34, 7
      %p80 = por %p78, %p79
      %p82 = scmp.ne.s32.totalorder %s65, %s81
      %p83 = scmp.eq.s32.totalorder %s34, 0
      %p84 = por %p82, %p83
      %s85 = ssub.s32 %s35, %s54
      %s86 = ssub.s32 %s36, %s50
      %s87 = sor.u32 %s85, %s86
      %p88 = scmp.eq.s32.totalorder %s87, 0
      %s90 = sadd.s32 %s89, 1
      %s91 = scalar_select %p88, %s89, %s90
      %p94 = pneg %p88
      %p95 = scmp.eq.s32.totalorder %s28, 7
      %p96 = por %p94, %p95
      %p97 = scmp.ne.s32.totalorder %s89, %s92
      %p98 = scmp.eq.s32.totalorder %s28, 0
      %p99 = por %p97, %p98
      %p100 = scmp.ne.s32.totalorder %s89, %s92
      %p101 = scmp.eq.s32.totalorder %s33, 7
      %p102 = por %p100, %p101
      %p103 = scmp.ne.s32.totalorder %s92, %s93
      %p104 = scmp.eq.s32.totalorder %s33, 0
      %p105 = por %p103, %p104
      %p106 = scmp.ne.s32.totalorder %s92, %s93
      %p107 = scmp.eq.s32.totalorder %s34, 7
      %p108 = por %p106, %p107
      %p110 = scmp.ne.s32.totalorder %s93, %s109
      %p111 = scmp.eq.s32.totalorder %s34, 0
      %p112 = por %p110, %p111
      %s113 = ssub.s32 %s35, %s54
      %s114 = ssub.s32 %s36, %s50
      %s115 = sor.u32 %s113, %s114
      %p116 = scmp.eq.s32.totalorder %s115, 0
      %s118 = sadd.s32 %s117, 1
      %s119 = scalar_select %p116, %s117, %s118
      %p122 = pneg %p116
      %p123 = scmp.eq.s32.totalorder %s28, 7
      %p124 = por %p122, %p123
      %p125 = scmp.ne.s32.totalorder %s117, %s120
      %p126 = scmp.eq.s32.totalorder %s28, 0
      %p127 = por %p125, %p126
      %p128 = scmp.ne.s32.totalorder %s117, %s120
      %p129 = scmp.eq.s32.totalorder %s33, 7
      %p130 = por %p128, %p129
      %p131 = scmp.ne.s32.totalorder %s120, %s121
      %p132 = scmp.eq.s32.totalorder %s33, 0
      %p133 = por %p131, %p132
      %p134 = scmp.ne.s32.totalorder %s120, %s121
      %p135 = scmp.eq.s32.totalorder %s34, 7
      %p136 = por %p134, %p135
      %p138 = scmp.ne.s32.totalorder %s121, %s137
      %p139 = scmp.eq.s32.totalorder %s34, 0
      %p140 = por %p138, %p139
      %s141 = ssub.s32 %s36, %s50
      %s142 = ssub.s32 %s37, %s46
      %s143 = sor.u32 %s141, %s142
      %p144 = scmp.eq.s32.totalorder %s143, 0
      %s146 = sadd.s32 %s145, 1
      %s147 = scalar_select %p144, %s145, %s146
      %p150 = pneg %p144
      %p151 = scmp.eq.s32.totalorder %s28, 7
      %p152 = por %p150, %p151
      %p153 = scmp.ne.s32.totalorder %s145, %s148
      %p154 = scmp.eq.s32.totalorder %s28, 0
      %p155 = por %p153, %p154
      %p156 = scmp.ne.s32.totalorder %s145, %s148
      %p157 = scmp.eq.s32.totalorder %s33, 7
      %p158 = por %p156, %p157
      %p159 = scmp.ne.s32.totalorder %s148, %s149
      %p160 = scmp.eq.s32.totalorder %s33, 0
      %p161 = por %p159, %p160
      %p162 = scmp.ne.s32.totalorder %s148, %s149
      %p163 = scmp.eq.s32.totalorder %s34, 7
      %p164 = por %p162, %p163
      %p166 = scmp.ne.s32.totalorder %s149, %s165
      %p167 = scmp.eq.s32.totalorder %s34, 0
      %p168 = por %p166, %p167
      %s169 = ssub.s32 %s35, %s54
      %p170 = scmp.eq.s32.totalorder %s169, 0
      %s172 = sadd.s32 %s171, 1
      %s173 = scalar_select %p170, %s171, %s172
      %p176 = pneg %p170
      %p177 = scmp.eq.s32.totalorder %s28, 7
      %p178 = por %p176, %p177
      %p179 = scmp.ne.s32.totalorder %s171, %s174
      %p180 = scmp.eq.s32.totalorder %s28, 0
      %p181 = por %p179, %p180
      %p182 = scmp.ne.s32.totalorder %s171, %s174
      %p183 = scmp.eq.s32.totalorder %s33, 7
      %p184 = por %p182, %p183
      %p185 = scmp.ne.s32.totalorder %s174, %s175
      %p186 = scmp.eq.s32.totalorder %s33, 0
      %p187 = por %p185, %p186
      %p188 = scmp.ne.s32.totalorder %s174, %s175
      %p189 = scmp.eq.s32.totalorder %s34, 7
      %p190 = por %p188, %p189
      %p192 = scmp.ne.s32.totalorder %s175, %s191
      %p193 = scmp.eq.s32.totalorder %s34, 0
      %p194 = por %p192, %p193
      %s195 = ssub.s32 %s35, %s54
      %s196 = ssub.s32 %s36, %s50
      %s197 = sor.u32 %s195, %s196
      %s198 = ssub.s32 %s37, %s46
      %s199 = sor.u32 %s197, %s198
      %p200 = scmp.eq.s32.totalorder %s199, 0
      %s202 = sadd.s32 %s201, 1
      %s203 = scalar_select %p200, %s201, %s202
      %p206 = pneg %p200
      %p207 = scmp.eq.s32.totalorder %s28, 7
      %p208 = por %p206, %p207
      %p209 = scmp.ne.s32.totalorder %s201, %s204
      %p210 = scmp.eq.s32.totalorder %s28, 0
      %p211 = por %p209, %p210
      %p212 = scmp.ne.s32.totalorder %s201, %s204
      %p213 = scmp.eq.s32.totalorder %s33, 7
      %p214 = por %p212, %p213
      %p215 = scmp.ne.s32.totalorder %s204, %s205
      %p216 = scmp.eq.s32.totalorder %s33, 0
      %p217 = por %p215, %p216
      %p218 = scmp.ne.s32.totalorder %s204, %s205
      %p219 = scmp.eq.s32.totalorder %s34, 7
      %p220 = por %p218, %p219
      %p222 = scmp.ne.s32.totalorder %s205, %s221
      %p223 = scmp.eq.s32.totalorder %s34, 0
      %p224 = por %p222, %p223
      %s225 = ssub.s32 %s35, %s54
      %s226 = ssub.s32 %s36, %s50
      %s227 = sor.u32 %s225, %s226
      %s228 = ssub.s32 %s37, %s46
      %s229 = sor.u32 %s227, %s228
      %p230 = scmp.eq.s32.totalorder %s229, 0
      %s232 = sadd.s32 %s231, 1
      %s233 = scalar_select %p230, %s231, %s232
      %p236 = pneg %p230
      %p237 = scmp.eq.s32.totalorder %s28, 7
      %p238 = por %p236, %p237
      %p239 = scmp.ne.s32.totalorder %s231, %s234
      %p240 = scmp.eq.s32.totalorder %s28, 0
      %p241 = por %p239, %p240
      %p242 = scmp.ne.s32.totalorder %s231, %s234
      %p243 = scmp.eq.s32.totalorder %s33, 7
      %p244 = por %p242, %p243
      %p245 = scmp.ne.s32.totalorder %s234, %s235
      %p246 = scmp.eq.s32.totalorder %s33, 0
      %p247 = por %p245, %p246
      %p248 = scmp.ne.s32.totalorder %s234, %s235
      %p249 = scmp.eq.s32.totalorder %s34, 7
      %p250 = por %p248, %p249
      %p252 = scmp.ne.s32.totalorder %s235, %s251
      %p253 = scmp.eq.s32.totalorder %s34, 0
      %p254 = por %p252, %p253
      %p255 = scmp.le.s32.totalorder 1, %s28
      %p256 = scmp.lt.s32.totalorder %s28, 9
      %p257 = pnand %p255, %p256
      %p258 = pneg %p257
      // Predicated region
      $region9: #{tpu_custom_call.1} parent=5 // pred_check
        _
      $region10: #{tpu_custom_call.1} parent=5 // pred_check_branch
        %260 = sbr.rel (%p257) target = $region12
      $region11: #{tpu_custom_call.1} parent=5 // pred_region
        %s261 = ssub.s32 %s28, 1
      $region12: #{tpu_custom_call.1} parent=5 // pred_fallthru
        _
      %p262 = scmp.lt.s32.totalorder %s28, 8
      // Predicated region
      $region13: #{tpu_custom_call.1} parent=5 // pred_check
        %p263 = pneg %p262
      $region14: #{tpu_custom_call.1} parent=5 // pred_check_branch
        %265 = sbr.rel (%p263) target = $region16
      $region15: #{tpu_custom_call.1} parent=5 // pred_region
        // Predicated region
        $region17: #{tpu_custom_call.1} parent=15 // pred_check
          %p266 = pneg %p71
        $region18: #{tpu_custom_call.1} parent=15 // pred_check_branch
          %268 = sbr.rel (%p266) target = $region20
        $region19: #{tpu_custom_call.1} parent=15 // pred_region
          %s269 = sand.u32 %s61, 1
          %s270 = scalar_lea.sflag [#allocation3], %s269
          %s271 = sand.u32 %s61, 1
          %s272 = smul.addr %s271, 8
          %s273 = scalar_lea.vmem [#allocation2], %s272
          %275 = vsyncadd %s270, 0
          %s276 = sadd.s32 %s37, %s36
          %s277 = smul.addr %s35, 4
          %s278 = sadd.s32 %s276, %s277
          %s279 = smul.addr %s278, 8
          %s280 = scalar_lea.hbm %s0, %s279
          %s282 = sshll.u32 %s280, 4
          %s283 = int_to_ptr.hbm [resolvable:$true] %s282
          %s284 = sshll.u32 %s273, 4
          %s285 = int_to_ptr.vmem [resolvable:$true] %s284
          %287 = dma.hbm_to_vmem [thread:$0]  %s283, 128, %s285, %s270
        $region20: #{tpu_custom_call.1} parent=15 // pred_fallthru
          _
        // Predicated region
        $region21: #{tpu_custom_call.1} parent=15 // pred_check
          %p288 = pneg %p99
        $region22: #{tpu_custom_call.1} parent=15 // pred_check_branch
          %290 = sbr.rel (%p288) target = $region24
        $region23: #{tpu_custom_call.1} parent=15 // pred_region
          %s291 = sand.u32 %s28, 1
          %s292 = scalar_lea.sflag [#allocation6], %s291
          %s293 = sand.u32 %s89, 1
          %s294 = smul.addr %s293, 8
          %s295 = scalar_lea.vmem [#allocation5], %s294
          %297 = vsyncadd %s292, 0
          %s298 = smul.addr %s35, 4
          %s299 = sadd.s32 %s36, %s298
          %s300 = smul.addr %s299, 8
          %s301 = scalar_lea.hbm %s1, %s300
          %s303 = sshll.u32 %s301, 4
          %s304 = int_to_ptr.hbm [resolvable:$true] %s303
          %s305 = sshll.u32 %s295, 4
          %s306 = int_to_ptr.vmem [resolvable:$true] %s305
          %308 = dma.hbm_to_vmem [thread:$0]  %s304, 128, %s306, %s292
        $region24: #{tpu_custom_call.1} parent=15 // pred_fallthru
          _
        // Predicated region
        $region25: #{tpu_custom_call.1} parent=15 // pred_check
          %p309 = pneg %p127
        $region26: #{tpu_custom_call.1} parent=15 // pred_check_branch
          %311 = sbr.rel (%p309) target = $region28
        $region27: #{tpu_custom_call.1} parent=15 // pred_region
          %s312 = sand.u32 %s28, 1
          %s313 = scalar_lea.sflag [#allocation6], %s312
          %s314 = sand.u32 %s117, 1
          %s315 = smul.addr %s314, 8
          %s316 = scalar_lea.vmem [#allocation7], %s315
          %318 = vsyncadd %s313, 0
          %s319 = smul.addr %s35, 4
          %s320 = sadd.s32 %s36, %s319
          %s321 = smul.addr %s320, 8
          %s322 = scalar_lea.hbm %s2, %s321
          %s324 = sshll.u32 %s322, 4
          %s325 = int_to_ptr.hbm [resolvable:$true] %s324
          %s326 = sshll.u32 %s316, 4
          %s327 = int_to_ptr.vmem [resolvable:$true] %s326
          %329 = dma.hbm_to_vmem [thread:$0]  %s325, 128, %s327, %s313
        $region28: #{tpu_custom_call.1} parent=15 // pred_fallthru
          _
        // Predicated region
        $region29: #{tpu_custom_call.1} parent=15 // pred_check
          %p330 = pneg %p155
        $region30: #{tpu_custom_call.1} parent=15 // pred_check_branch
          %332 = sbr.rel (%p330) target = $region32
        $region31: #{tpu_custom_call.1} parent=15 // pred_region
          %s333 = sand.u32 %s145, 1
          %s334 = scalar_lea.sflag [#allocation9], %s333
          %s335 = sand.u32 %s145, 1
          %s336 = smul.addr %s335, 8
          %s337 = scalar_lea.vmem [#allocation8], %s336
          %339 = vsyncadd %s334, 0
          %s340 = sadd.s32 %s37, %s36
          %s341 = smul.addr %s340, 8
          %s342 = scalar_lea.hbm %s3, %s341
          %s344 = sshll.u32 %s342, 4
          %s345 = int_to_ptr.hbm [resolvable:$true] %s344
          %s346 = sshll.u32 %s337, 4
          %s347 = int_to_ptr.vmem [resolvable:$true] %s346
          %349 = dma.hbm_to_vmem [thread:$0]  %s345, 128, %s347, %s334
        $region32: #{tpu_custom_call.1} parent=15 // pred_fallthru
          _
        // Predicated region
        $region33: #{tpu_custom_call.1} parent=15 // pred_check
          %p350 = pneg %p181
        $region34: #{tpu_custom_call.1} parent=15 // pred_check_branch
          %352 = sbr.rel (%p350) target = $region36
        $region35: #{tpu_custom_call.1} parent=15 // pred_region
          %p353 = scmp.lt.s32.totalorder %s35, 1
          %s354 = scalar_select %p353, %s35, 1
          %s355 = scalar_lea.vmem %s4, %s354
        $region36: #{tpu_custom_call.1} parent=15 // pred_fallthru
          _
      $region16: #{tpu_custom_call.1} parent=5 // pred_fallthru
        _
      %p356 = scmp.le.s32.totalorder 1, %s28
      %p357 = scmp.lt.s32.totalorder %s28, 9
      %p358 = pnand %p356, %p357
      %p359 = pneg %p358
      // Predicated region
      $region37: #{tpu_custom_call.1} parent=5 // pred_check
        _
      $region38: #{tpu_custom_call.1} parent=5 // pred_check_branch
        %361 = sbr.rel (%p358) target = $region40
      $region39: #{tpu_custom_call.1} parent=5 // pred_region
        %s362 = ssub.s32 %s28, 1
        %s363 = sand.u32 %s64, 1
        %s364 = scalar_lea.sflag [#allocation3], %s363
        %s365 = sand.u32 %s64, 1
        %s366 = smul.addr %s365, 8
        %s367 = scalar_lea.vmem [#allocation2], %s366
        // Predicated region
        $region41: #{tpu_custom_call.1} parent=39 // pred_check
          %p368 = pneg %p77
        $region42: #{tpu_custom_call.1} parent=39 // pred_check_branch
          %370 = sbr.rel (%p368) target = $region44
        $region43: #{tpu_custom_call.1} parent=39 // pred_region
          %372 = dma.done %s364, 128
        $region44: #{tpu_custom_call.1} parent=39 // pred_fallthru
          _
        %s373 = sand.u32 %s33, 1
        %s374 = scalar_lea.sflag [#allocation6], %s373
        %s375 = sand.u32 %s92, 1
        %s376 = smul.addr %s375, 8
        %s377 = scalar_lea.vmem [#allocation5], %s376
        // Predicated region
        $region45: #{tpu_custom_call.1} parent=39 // pred_check
          %p378 = pneg %p105
        $region46: #{tpu_custom_call.1} parent=39 // pred_check_branch
          %380 = sbr.rel (%p378) target = $region48
        $region47: #{tpu_custom_call.1} parent=39 // pred_region
          %382 = dma.done %s374, 128
        $region48: #{tpu_custom_call.1} parent=39 // pred_fallthru
          _
        %s383 = sand.u32 %s33, 1
        %s384 = scalar_lea.sflag [#allocation6], %s383
        %s385 = sand.u32 %s120, 1
        %s386 = smul.addr %s385, 8
        %s387 = scalar_lea.vmem [#allocation7], %s386
        // Predicated region
        $region49: #{tpu_custom_call.1} parent=39 // pred_check
          %p388 = pneg %p133
        $region50: #{tpu_custom_call.1} parent=39 // pred_check_branch
          %390 = sbr.rel (%p388) target = $region52
        $region51: #{tpu_custom_call.1} parent=39 // pred_region
          %392 = dma.done %s384, 128
        $region52: #{tpu_custom_call.1} parent=39 // pred_fallthru
          _
        %s393 = sand.u32 %s148, 1
        %s394 = scalar_lea.sflag [#allocation9], %s393
        %s395 = sand.u32 %s148, 1
        %s396 = smul.addr %s395, 8
        %s397 = scalar_lea.vmem [#allocation8], %s396
        // Predicated region
        $region53: #{tpu_custom_call.1} parent=39 // pred_check
          %p398 = pneg %p161
        $region54: #{tpu_custom_call.1} parent=39 // pred_check_branch
          %400 = sbr.rel (%p398) target = $region56
        $region55: #{tpu_custom_call.1} parent=39 // pred_region
          %402 = dma.done %s394, 128
        $region56: #{tpu_custom_call.1} parent=39 // pred_fallthru
          _
        %s403 = sand.u32 %s64, 1
        %s404 = scalar_lea.sflag [#allocation3], %s403
        %s405 = sand.u32 %s64, 1
        %s406 = smul.addr %s405, 8
        %s407 = scalar_lea.vmem [#allocation2], %s406
        %p408 = pneg %p77
        %p409 = pneg %p74
        %s410 = sand.u32 %s33, 1
        %s411 = scalar_lea.sflag [#allocation6], %s410
        %s412 = sand.u32 %s92, 1
        %s413 = smul.addr %s412, 8
        %s414 = scalar_lea.vmem [#allocation5], %s413
        %p415 = pneg %p105
        %p416 = pneg %p102
        %s417 = sand.u32 %s33, 1
        %s418 = scalar_lea.sflag [#allocation6], %s417
        %s419 = sand.u32 %s120, 1
        %s420 = smul.addr %s419, 8
        %s421 = scalar_lea.vmem [#allocation7], %s420
        %p422 = pneg %p133
        %p423 = pneg %p130
        %s424 = sand.u32 %s148, 1
        %s425 = scalar_lea.sflag [#allocation9], %s424
        %s426 = sand.u32 %s148, 1
        %s427 = smul.addr %s426, 8
        %s428 = scalar_lea.vmem [#allocation8], %s427
        %p429 = pneg %p161
        %p430 = pneg %p158
        %p431 = scmp.lt.s32.totalorder %s38, 1
        %s432 = scalar_select %p431, %s38, 1
        %s433 = scalar_lea.vmem %s4, %s432
        %p434 = pneg %p187
        %p435 = pneg %p184
        %p436 = pneg %p217
        %p437 = pneg %p214
        %s438 = sand.u32 %s204, 1
        %s439 = scalar_lea.sflag [#allocation4], %s438
        %s440 = sand.u32 %s204, 1
        %s441 = smul.addr %s440, 8
        %s442 = scalar_lea.vmem [#allocation10], %s441
        %p443 = pneg %p247
        %p444 = pneg %p244
        %s445 = sand.u32 %s234, 1
        %s446 = scalar_lea.sflag [#allocation12], %s445
        %s447 = sand.u32 %s234, 1
        %s448 = smul.addr %s447, 8
        %s449 = scalar_lea.vmem [#allocation11], %s448
        %p450 = scmp.lt.s32.totalorder %s38, 1
        %s451 = scalar_select %p450, %s38, 1
        %s452 = scalar_lea.vmem %s4, %s451
        %v453 = vld [vmem:[%s367] sm:$0xff]
        %v454 = vmul.f32 %v453, 0.17677669
        %v455 = vld [vmem:[%s377] sm:$0xff]
        %v456 = vld [vmem:[%s397] sm:$0xff]
        %vm457 = vcmask 261120
        %v459 = vsel %vm457, %v454, 0
        %v462 = vsel %vm457, %v455, 0
        %464 = vmatpush.xpose.msra.mxu0 0.0
        %465 = vmatpush.xpose.msra.mxu0 0.0
        %466 = vmatpush.xpose.msra.mxu0 0.0
        %467 = vmatpush.xpose.msra.mxu0 0.0
        %468 = vmatpush.xpose.msra.mxu0 0.0
        %469 = vmatpush.xpose.msra.mxu0 0.0
        %470 = vmatpush.xpose.msra.mxu0 0.0
        %471 = vmatpush.xpose.msra.mxu0 0.0
        %472 = vmatpush.xpose.msra.mxu0 0.0
        %473 = vmatpush.xpose.msra.mxu0 0.0
        %474 = vmatpush.xpose.msra.mxu0 0.0
        %475 = vmatpush.xpose.msra.mxu0 0.0
        %476 = vmatpush.xpose.msra.mxu0 0.0
        %477 = vmatpush.xpose.msra.mxu0 0.0
        %478 = vmatpush.xpose.msra.mxu0 0.0
        %479 = vmatpush.xpose.msra.mxu0 %v462
        %480 = vmatmul.f32.gmra.mxu0 %v459
        %v481 = vpop.f32.mrf.mxu0
        %v482 = vadd.f32 %v456, %v481
        %483 = vdwg.mxu0
        %v484 = vld [vmem:[%s452] sm:$0x1]
        %v486 = vperm.slane %v484, 0
        %v488 = vadd.f32 %v482, %v486
        %vm489 = vcmask 64512
        %v490 = vsel %vm489, %v488, -inf
        %491 = vmax.xlane.f32.xlu0 %v490
        %v492 = vpop.xlane.xlu0 %491
        %v493 = vsub.f32 %v488, %v492
        %v494 = vmul.f32 %v493, 1.442695
        %v495 = vpow.pop %v494
        %v496 = vsel %vm489, %v495, 0.0
        %497 = vadd.xlane.f32.xlu0 %v496
        %v498 = vpop.xlane.xlu0 %497
        %v499 = vrcp.pop %v498
        %v500 = vmul.f32 %v498, %v499
        %v501 = vsub.f32 1.0, %v500
        %v502 = vmul.f32 %v499, %v501
        %v503 = vadd.f32 %v499, %v502
        %vm504 = vweird.f32 %v498
        %vm505 = vweird.f32 %v499
        %vm506 = vmor %vm504, %vm505
        %v507 = vsel %vm506, %v499, %v503
        %v508 = vand.u32 2147483647, %v498
        %vm509 = vcmp.eq.f32.partialorder %v508, 8.507059e+37
        %v510 = vand.u32 %v498, 2147483648
        %v511 = vor.u32 1.1754944e-38, %v510
        %v512 = vsel %vm509, %v511, %v507
        %v513 = vmul.f32 %v495, %v512
        %v514 = vld [vmem:[%s387] sm:$0xff]
        %v516 = vsel %vm489, %v513, 0
        %518 = vmatpush.msra.mxu0 0.0
        %519 = vmatpush.msra.mxu0 0.0
        %520 = vmatpush.msra.mxu0 0.0
        %521 = vmatpush.msra.mxu0 0.0
        %522 = vmatpush.msra.mxu0 0.0
        %523 = vmatpush.msra.mxu0 0.0
        %524 = vmatpush.msra.mxu0 0.0
        %525 = vmatpush.msra.mxu0 0.0
        %526 = vmatpush.msra.mxu0 0.0
        %527 = vmatpush.msra.mxu0 0.0
        %528 = vmatpush.msra.mxu0 0.0
        %529 = vmatpush.msra.mxu0 0.0
        %530 = vmatpush.msra.mxu0 0.0
        %531 = vmatpush.msra.mxu0 0.0
        %532 = vmatpush.msra.mxu0 0.0
        %533 = vmatpush.msra.mxu0 %v514
        %534 = vmatmul.f32.gmra.mxu0 %v516
        %v535 = vpop.f32.mrf.mxu0
        %v536 = vadd.f32 0.0, %v535
        %537 = vdwg.mxu0
        %538 = vst.msk [vmem:[%s449] sm:$0xff] %vm489, %v513
        %539 = vst.msk [vmem:[%s442] sm:$0xff] %vm457, %v536
        %s540 = sand.u32 %s204, 1
        %s541 = scalar_lea.sflag [#allocation4], %s540
        %s542 = sand.u32 %s204, 1
        %s543 = smul.addr %s542, 8
        %s544 = scalar_lea.vmem [#allocation10], %s543
        %s545 = sand.u32 %s234, 1
        %s546 = scalar_lea.sflag [#allocation12], %s545
        %s547 = sand.u32 %s234, 1
        %s548 = smul.addr %s547, 8
        %s549 = scalar_lea.vmem [#allocation11], %s548
        // Predicated region
        $region57: #{tpu_custom_call.1} parent=39 // pred_check
          %p550 = pneg %p214
        $region58: #{tpu_custom_call.1} parent=39 // pred_check_branch
          %552 = sbr.rel (%p550) target = $region60
        $region59: #{tpu_custom_call.1} parent=39 // pred_region
          %554 = vsyncadd %s541, 0
          %s555 = sadd.s32 %s40, %s39
          %s556 = smul.addr %s38, 4
          %s557 = sadd.s32 %s555, %s556
          %s558 = smul.addr %s557, 8
          %s559 = scalar_lea.hbm %s5, %s558
          %s561 = sshll.u32 %s544, 4
          %s562 = int_to_ptr.vmem [resolvable:$true] %s561
          %s563 = sshll.u32 %s559, 4
          %s564 = int_to_ptr.hbm [resolvable:$true] %s563
          %566 = dma.vmem_to_hbm [thread:$0]  %s562, 128, %s564, %s541
        $region60: #{tpu_custom_call.1} parent=39 // pred_fallthru
          _
        // Predicated region
        $region61: #{tpu_custom_call.1} parent=39 // pred_check
          %p567 = pneg %p244
        $region62: #{tpu_custom_call.1} parent=39 // pred_check_branch
          %569 = sbr.rel (%p567) target = $region64
        $region63: #{tpu_custom_call.1} parent=39 // pred_region
          %571 = vsyncadd %s546, 0
          %s572 = sadd.s32 %s40, %s39
          %s573 = smul.addr %s38, 4
          %s574 = sadd.s32 %s572, %s573
          %s575 = smul.addr %s574, 8
          %s576 = scalar_lea.hbm %s6, %s575
          %s578 = sshll.u32 %s549, 4
          %s579 = int_to_ptr.vmem [resolvable:$true] %s578
          %s580 = sshll.u32 %s576, 4
          %s581 = int_to_ptr.hbm [resolvable:$true] %s580
          %583 = dma.vmem_to_hbm [thread:$0]  %s579, 128, %s581, %s546
        $region64: #{tpu_custom_call.1} parent=39 // pred_fallthru
          _
      $region40: #{tpu_custom_call.1} parent=5 // pred_fallthru
        _
      %p584 = scmp.le.s32.totalorder 2, %s28
      // Predicated region
      $region65: #{tpu_custom_call.1} parent=5 // pred_check
        %p585 = pneg %p584
      $region66: #{tpu_custom_call.1} parent=5 // pred_check_branch
        %587 = sbr.rel (%p585) target = $region68
      $region67: #{tpu_custom_call.1} parent=5 // pred_region
        %s588 = ssub.s32 %s28, 2
        // Predicated region
        $region69: #{tpu_custom_call.1} parent=67 // pred_check
          %p589 = pneg %p220
        $region70: #{tpu_custom_call.1} parent=67 // pred_check_branch
          %591 = sbr.rel (%p589) target = $region72
        $region71: #{tpu_custom_call.1} parent=67 // pred_region
          %s592 = sand.u32 %s205, 1
          %s593 = scalar_lea.sflag [#allocation4], %s592
          %s594 = sand.u32 %s205, 1
          %s595 = smul.addr %s594, 8
          %s596 = scalar_lea.vmem [#allocation10], %s595
          %598 = dma.done %s593, 128
        $region72: #{tpu_custom_call.1} parent=67 // pred_fallthru
          _
        // Predicated region
        $region73: #{tpu_custom_call.1} parent=67 // pred_check
          %p599 = pneg %p250
        $region74: #{tpu_custom_call.1} parent=67 // pred_check_branch
          %601 = sbr.rel (%p599) target = $region76
        $region75: #{tpu_custom_call.1} parent=67 // pred_region
          %s602 = sand.u32 %s235, 1
          %s603 = scalar_lea.sflag [#allocation12], %s602
          %s604 = sand.u32 %s235, 1
          %s605 = smul.addr %s604, 8
          %s606 = scalar_lea.vmem [#allocation11], %s605
          %608 = dma.done %s603, 128
        $region76: #{tpu_custom_call.1} parent=67 // pred_fallthru
          _
      $region68: #{tpu_custom_call.1} parent=5 // pred_fallthru
        _
    $region6: #{tpu_custom_call.1} parent=1 // loop_footer
      %s32 = sadd.s32 1, %s28
    $region7: #{tpu_custom_call.1} parent=1 // loop_footer_branch
      %27 = sbr.rel target = $region3
    $region8: #{tpu_custom_call.1} parent=1 // loop_exit
      _
    %609 = vsyncpa [#allocation3], 1
    %s610 = scalar_lea.sflag [#allocation3], 1
    %611 = vsyncpa %s610, 1
    %612 = vsyncpa [#allocation6], 1
    %s613 = scalar_lea.sflag [#allocation6], 1
    %614 = vsyncpa %s613, 1
    %615 = vsyncpa [#allocation9], 1
    %s616 = scalar_lea.sflag [#allocation9], 1
    %617 = vsyncpa %s616, 1
    %618 = vsyncpa [#allocation4], 1
    %s619 = scalar_lea.sflag [#allocation4], 1
    %620 = vsyncpa %s619, 1
    %621 = vsyncpa [#allocation12], 1
    %s622 = scalar_lea.sflag [#allocation12], 1
    %623 = vsyncpa %s622, 1

</llo_original>
